<compile_context>
chip_gen: v5e
topology: v5e:2x2
jax: 0.10.0
libtpu: 0.0.40
codegen_flags: <defaults>
</compile_context>

<pallas_src>
import functools

import jax
import jax.numpy as jnp
from jax.experimental import pallas as pl
from jax.experimental.pallas import tpu as pltpu


def pooled_embed_kernel(x_ref, w1_ref, b1_ref, w2_ref, b2_ref, o_ref, acc_ref, *, tk):
    k = pl.program_id(0)

    @pl.when(k == 0)
    def _():
        acc_ref[...] = jnp.zeros_like(acc_ref)

    # Linear1 tile + SiLU: [B, TE] @ [TE, tk] -> [B, tk]  (bf16 in, f32 accumulate)
    h = jnp.dot(x_ref[...], w1_ref[...], preferred_element_type=jnp.float32)
    start = pl.multiple_of(k * tk, tk)
    h = h + b1_ref[:, pl.ds(start, tk)].astype(jnp.float32)
    h = h * jax.nn.sigmoid(h)  # SiLU; sigmoid lowers to lax.logistic (EUP)

    # Linear2 partial product: [B, tk] @ [tk, H] accumulated into [B, H] f32 scratch.
    acc_ref[...] += jnp.dot(h.astype(w2_ref.dtype), w2_ref[...],
                            preferred_element_type=jnp.float32)

    @pl.when(k == pl.num_programs(0) - 1)
    def _():
        o_ref[...] = (acc_ref[...] + b2_ref[...].astype(jnp.float32)).astype(o_ref.dtype)


def init_pooled_embed_params(w1, b1, w2, b2, *, weight_dtype=jnp.bfloat16):
    """One-time module-init conversion.

    Weights are stored [in, out] (PyTorch nn.Linear weight transposed) and cast to the
    streaming dtype exactly once here — never per forward call — so the kernel's bf16
    DMA stream is the only per-call HBM traffic.
    """
    H = w1.shape[1]
    assert w2.shape == (H, H) and b1.shape == (H,) and b2.shape == (H,)
    return dict(
        w1=jnp.asarray(w1, weight_dtype),
        b1=jnp.asarray(b1, jnp.float32).reshape(1, H),
        w2=jnp.asarray(w2, weight_dtype),
        b2=jnp.asarray(b2, jnp.float32).reshape(1, H),
    )


def pooled_embed(x, w1, b1, w2, b2, *, tk=None, out_dtype=None):
    """x: [B, text_emb_dim]; w1: [TE, H] (bf16); w2: [H, H] (bf16); b1,b2: [1, H] f32.

    Pass weights from init_pooled_embed_params (already bf16 / reshaped); this wrapper
    does NOT cast weights. Single output tile (tn == H) on every TPU generation.
    """
    B, TE = x.shape
    assert w1.shape[0] == TE
    H = w1.shape[1]
    assert w2.shape == (H, H) and b1.shape == (1, H) and b2.shape == (1, H)
    out_dtype = out_dtype or x.dtype

    # x is tiny (B x TE): casting it to the weight streaming dtype per call is free.
    xs = x.astype(w1.dtype)

    # Reduction tile over the intermediate hidden dim (multiple of 128 for lanes;
    # >= 256 keeps v5e strided-DMA segments >= 512 B; 512/1024 amortize step overhead).
    if tk is None:
        tk = next((t for t in (1024, 512, 256) if H % t == 0), H)
    assert H % tk == 0 and (tk % 128 == 0 or tk == H)
    n_steps = H // tk

    w_isz = jnp.dtype(w1.dtype).itemsize
    out_isz = jnp.dtype(out_dtype).itemsize

    flops = 2 * B * (TE * H + H * H)
    bytes_accessed = (
        xs.size * w_isz
        + w1.size * w_isz          # w1 streamed exactly once
        + w2.size * w_isz          # w2 streamed exactly once
        + (b1.size + b2.size) * 4  # resident biases, read once
        + B * H * out_isz
    )

    # Double-buffered streamed tiles + resident operands + f32 accumulator, with headroom.
    streamed = TE * tk * w_isz + tk * H * w_isz
    resident = B * TE * w_isz + 2 * H * 4 + B * H * out_isz
    vmem_bytes = 2 * (streamed + resident) + B * H * 4
    vmem_limit = min(max(vmem_bytes + (4 << 20), 16 << 20), 56 << 20)

    kernel = functools.partial(pooled_embed_kernel, tk=tk)

    return pl.pallas_call(
        kernel,
        out_shape=jax.ShapeDtypeStruct((B, H), out_dtype),
        grid_spec=pltpu.PrefetchScalarGridSpec(
            num_scalar_prefetch=0,
            grid=(n_steps,),
            in_specs=[
                pl.BlockSpec((B, TE), lambda k: (0, 0)),    # x (resident)
                pl.BlockSpec((TE, tk), lambda k: (0, k)),   # w1 tile (streamed)
                pl.BlockSpec((1, H), lambda k: (0, 0)),     # b1 (resident, sliced in-kernel)
                pl.BlockSpec((tk, H), lambda k: (k, 0)),    # w2 tile (streamed)
                pl.BlockSpec((1, H), lambda k: (0, 0)),     # b2 (resident)
            ],
            out_specs=pl.BlockSpec((B, H), lambda k: (0, 0)),
            scratch_shapes=[pltpu.VMEM((B, H), jnp.float32)],
        ),
        compiler_params=pltpu.CompilerParams(
            dimension_semantics=("arbitrary",),
            vmem_limit_bytes=vmem_limit,
        ),
        cost_estimate=pl.CostEstimate(
            flops=flops,
            transcendentals=B * H,
            bytes_accessed=bytes_accessed,
        ),
    )(xs, w1, b1, w2, b2)


def pooled_embed_ref_bf16(x, w1, b1, w2, b2):
    """Reference mirroring the kernel's cast points (bf16 operands, f32 accumulate)."""
    xb = x.astype(jnp.bfloat16).astype(jnp.float32)
    w1b = w1.astype(jnp.bfloat16).astype(jnp.float32)
    w2b = w2.astype(jnp.bfloat16).astype(jnp.float32)
    h = xb @ w1b + b1.astype(jnp.float32)
    h = h * jax.nn.sigmoid(h)
    hb = h.astype(jnp.bfloat16).astype(jnp.float32)
    y = hb @ w2b + b2.astype(jnp.float32)
    return y.astype(x.dtype)


def pooled_embed_ref_f32(x, w1, b1, w2, b2):
    """Pure-f32 (PyTorch-equivalent) reference: Linear2(SiLU(Linear1(x)))."""
    h = x @ w1 + b1
    h = h * jax.nn.sigmoid(h)
    return h @ w2 + b2


if __name__ == "__main__":
    # Small shapes consistent with the module. tk=256 (>= 256 per v5e guidance) gives
    # 2 reduction steps so the accumulator init/finalize path is exercised.
    B, TEXT_EMB_DIM, HIDDEN = 2, 128, 512

    key = jax.random.PRNGKey(0)
    k_x, k_w1, k_b1, k_w2, k_b2 = jax.random.split(key, 5)

    x = jax.random.normal(k_x, (B, TEXT_EMB_DIM), dtype=jnp.float32)
    # (PyTorch nn.Linear stores weight as [out, in]; we keep them as [in, out].)
    w1 = jax.random.normal(k_w1, (TEXT_EMB_DIM, HIDDEN), dtype=jnp.float32) * 0.05
    b1 = jax.random.normal(k_b1, (HIDDEN,), dtype=jnp.float32) * 0.01
    w2 = jax.random.normal(k_w2, (HIDDEN, HIDDEN), dtype=jnp.float32) * 0.05
    b2 = jax.random.normal(k_b2, (HIDDEN,), dtype=jnp.float32) * 0.01

    # One-time weight preparation (bf16 streaming dtype) — done at "module init",
    # not per forward call.
    params = init_pooled_embed_params(w1, b1, w2, b2)

    out = pooled_embed(x, params["w1"], params["b1"], params["w2"], params["b2"], tk=256)
    out = jax.block_until_ready(out)
    assert out.shape == (B, HIDDEN)

    # 1) Self-consistency against a reference mirroring the kernel's bf16 cast points.
    ref_bf16 = pooled_embed_ref_bf16(x, w1, b1, w2, b2)
    assert jnp.allclose(out, ref_bf16, atol=2e-3, rtol=2e-3), (
        float(jnp.max(jnp.abs(out - ref_bf16))))

    # 2) Against the pure-f32 (PyTorch-equivalent) math, with tolerance for bf16
    #    weight / intermediate rounding.
    ref_f32 = pooled_embed_ref_f32(x, w1, b1, w2, b2)
    assert jnp.allclose(out, ref_f32, atol=5e-2, rtol=5e-2), (
        float(jnp.max(jnp.abs(out - ref_f32))))

    print("KERNEL_OK")
</pallas_src>

<mosaic_0001>
module attributes {stable_mosaic.version = 11 : i64} {
  func.func @pooled_embed_kernel(%arg0: i32, %arg1: memref<2x128xbf16, #tpu.memory_space<vmem>>, %arg2: memref<128x256xbf16, #tpu.memory_space<vmem>>, %arg3: memref<1x512xf32, #tpu.memory_space<vmem>>, %arg4: memref<256x512xbf16, #tpu.memory_space<vmem>>, %arg5: memref<1x512xf32, #tpu.memory_space<vmem>>, %arg6: memref<2x512xf32, #tpu.memory_space<vmem>>, %arg7: memref<2x512xf32, #tpu.memory_space<vmem>>) attributes {dimension_semantics = [#tpu.dimension_semantics<arbitrary>], iteration_bounds = array<i64: 2>, scalar_prefetch = 0 : i64, scratch_operands = 1 : i64, tpu.core_type = #tpu.core_type<tc>, window_params = [{pipeline_mode = #tpu.pipeline_mode<synchronous>, transform_indices = @transform_0, window_bounds = array<i64: 2, 128>}, {transform_indices = @transform_1, window_bounds = array<i64: 128, 256>}, {pipeline_mode = #tpu.pipeline_mode<synchronous>, transform_indices = @transform_2, window_bounds = array<i64: 1, 512>}, {transform_indices = @transform_3, window_bounds = array<i64: 256, 512>}, {pipeline_mode = #tpu.pipeline_mode<synchronous>, transform_indices = @transform_4, window_bounds = array<i64: 1, 512>}, {pipeline_mode = #tpu.pipeline_mode<synchronous>, transform_indices = @transform_5, window_bounds = array<i64: 2, 512>}]} {
    %c0_i32 = arith.constant 0 : i32
    %0 = arith.cmpi eq, %arg0, %c0_i32 : i32
    %1 = arith.extui %0 : i1 to i32
    %c0_i32_0 = arith.constant 0 : i32
    %2 = arith.cmpi ne, %1, %c0_i32_0 : i32
    scf.if %2 {
      %cst_14 = arith.constant 0.000000e+00 : f32
      %27 = vector.broadcast %cst_14 : f32 to vector<2x512xf32>
      %c0_15 = arith.constant 0 : index
      %c0_16 = arith.constant 0 : index
      %28 = vector.load %arg7[%c0_15, %c0_16] : memref<2x512xf32, #tpu.memory_space<vmem>>, vector<2x512xf32>
      tpu.vector_store %arg7[%c0_15, %c0_16], %27 {strides = array<i32>} : memref<2x512xf32, #tpu.memory_space<vmem>>, vector<2x512xf32>,
    } else {
    }
    %c0 = arith.constant 0 : index
    %c0_1 = arith.constant 0 : index
    %3 = vector.load %arg1[%c0, %c0_1] : memref<2x128xbf16, #tpu.memory_space<vmem>>, vector<2x128xbf16>
    %c0_2 = arith.constant 0 : index
    %c0_3 = arith.constant 0 : index
    %4 = vector.load %arg2[%c0_2, %c0_3] : memref<128x256xbf16, #tpu.memory_space<vmem>>, vector<128x256xbf16>
    %cst = arith.constant dense<0.000000e+00> : vector<2x256xf32>
    %5 = tpu.matmul %3, %4, %cst {dimension_numbers = #tpu.dot_dimension_numbers<[1], [0], [0], [1], [0, 0, 1, 1], [], []>} : vector<2x128xbf16>, vector<128x256xbf16>, vector<2x256xf32> -> vector<2x256xf32>
    %c256_i32 = arith.constant 256 : i32
    %6 = arith.muli %arg0, %c256_i32 : i32
    %7 = tpu.assume_multiple %6, 256 : i32
    %c0_4 = arith.constant 0 : index
    %8 = arith.index_cast %7 : i32 to index
    %9 = vector.load %arg3[%c0_4, %8] : memref<1x512xf32, #tpu.memory_space<vmem>>, vector<1x256xf32>
    %10 = vector.broadcast %9 : vector<1x256xf32> to vector<2x256xf32>
    %11 = arith.addf %5, %10 : vector<2x256xf32>
    %12 = arith.negf %11 : vector<2x256xf32>
    %13 = math.exp %12 : vector<2x256xf32>
    %cst_5 = arith.constant 1.000000e+00 : f32
    %14 = vector.broadcast %cst_5 : f32 to vector<2x256xf32>
    %15 = arith.addf %14, %13 : vector<2x256xf32>
    %16 = arith.divf %14, %15 : vector<2x256xf32>
    %17 = arith.mulf %11, %16 : vector<2x256xf32>
    %c0_6 = arith.constant 0 : index
    %c0_7 = arith.constant 0 : index
    %18 = vector.load %arg7[%c0_6, %c0_7] : memref<2x512xf32, #tpu.memory_space<vmem>>, vector<2x512xf32>
    %19 = arith.truncf %17 : vector<2x256xf32> to vector<2x256xbf16>
    %c0_8 = arith.constant 0 : index
    %c0_9 = arith.constant 0 : index
    %20 = vector.load %arg4[%c0_8, %c0_9] : memref<256x512xbf16, #tpu.memory_space<vmem>>, vector<256x512xbf16>
    %cst_10 = arith.constant dense<0.000000e+00> : vector<2x512xf32>
    %21 = tpu.matmul %19, %20, %cst_10 {dimension_numbers = #tpu.dot_dimension_numbers<[1], [0], [0], [1], [0, 0, 1, 1], [], []>} : vector<2x256xbf16>, vector<256x512xbf16>, vector<2x512xf32> -> vector<2x512xf32>
    %22 = arith.addf %18, %21 : vector<2x512xf32>
    %c0_11 = arith.constant 0 : index
    %c0_12 = arith.constant 0 : index
    %23 = vector.load %arg7[%c0_11, %c0_12] : memref<2x512xf32, #tpu.memory_space<vmem>>, vector<2x512xf32>
    tpu.vector_store %arg7[%c0_11, %c0_12], %22 {strides = array<i32>} : memref<2x512xf32, #tpu.memory_space<vmem>>, vector<2x512xf32>,
    %c1_i32 = arith.constant 1 : i32
    %24 = arith.cmpi eq, %arg0, %c1_i32 : i32
    %25 = arith.extui %24 : i1 to i32
    %c0_i32_13 = arith.constant 0 : i32
    %26 = arith.cmpi ne, %25, %c0_i32_13 : i32
    scf.if %26 {
      %c0_14 = arith.constant 0 : index
      %c0_15 = arith.constant 0 : index
      %27 = vector.load %arg7[%c0_14, %c0_15] : memref<2x512xf32, #tpu.memory_space<vmem>>, vector<2x512xf32>
      %c0_16 = arith.constant 0 : index
      %c0_17 = arith.constant 0 : index
      %28 = vector.load %arg5[%c0_16, %c0_17] : memref<1x512xf32, #tpu.memory_space<vmem>>, vector<1x512xf32>
      %29 = vector.broadcast %28 : vector<1x512xf32> to vector<2x512xf32>
      %30 = arith.addf %27, %29 : vector<2x512xf32>
      %c0_18 = arith.constant 0 : index
      %c0_19 = arith.constant 0 : index
      %31 = vector.load %arg6[%c0_18, %c0_19] : memref<2x512xf32, #tpu.memory_space<vmem>>, vector<2x512xf32>
      tpu.vector_store %arg6[%c0_18, %c0_19], %30 {strides = array<i32>} : memref<2x512xf32, #tpu.memory_space<vmem>>, vector<2x512xf32>,
    } else {
    }
    return
  }
  func.func @transform_0(%arg0: i32) -> (i32, i32) {
    %c0_i32 = arith.constant 0 : i32
    %c0_i32_0 = arith.constant 0 : i32
    %c0_i32_1 = arith.constant 0 : i32
    return %c0_i32, %c0_i32_0 : i32, i32
  }
  func.func @transform_1(%arg0: i32) -> (i32, i32) {
    %c0_i32 = arith.constant 0 : i32
    %c0_i32_0 = arith.constant 0 : i32
    return %c0_i32, %arg0 : i32, i32
  }
  func.func @transform_2(%arg0: i32) -> (i32, i32) {
    %c0_i32 = arith.constant 0 : i32
    %c0_i32_0 = arith.constant 0 : i32
    %c0_i32_1 = arith.constant 0 : i32
    return %c0_i32, %c0_i32_0 : i32, i32
  }
  func.func @transform_3(%arg0: i32) -> (i32, i32) {
    %c0_i32 = arith.constant 0 : i32
    %c0_i32_0 = arith.constant 0 : i32
    return %arg0, %c0_i32 : i32, i32
  }
  func.func @transform_4(%arg0: i32) -> (i32, i32) {
    %c0_i32 = arith.constant 0 : i32
    %c0_i32_0 = arith.constant 0 : i32
    %c0_i32_1 = arith.constant 0 : i32
    return %c0_i32, %c0_i32_0 : i32, i32
  }
  func.func @transform_5(%arg0: i32) -> (i32, i32) {
    %c0_i32 = arith.constant 0 : i32
    %c0_i32_0 = arith.constant 0 : i32
    %c0_i32_1 = arith.constant 0 : i32
    return %c0_i32, %c0_i32_0 : i32, i32
  }
}

</mosaic_0001>

<llo_original>
// kernel: tpu_custom_call.1
$region0: #{tpu_custom_call.1}
  #allocation0 [shape = 'u32[]', space=smem, size = 0x4, offset = 0x4, fixed_abs, tag = 'smem constant byte address 0x4 - core index']
  #allocation1 [shape = 'u32[72,128]{1,0:T(1,128)}', space=vmem, size = 0x9000, scoped, tag = 'internal scratch']
  #allocation2 [shape = 'f32[2,512]{1,0:T(2,128)}', space=vmem, size = 0x1000, scoped, tag = 'scratch operand']
  %s0 = inlined_call_operand.hbm [shape: bf16[2,128], index: 0, kind: input, shape index: {}]
  %s1 = inlined_call_operand.hbm [shape: bf16[128,512], index: 1, kind: input, shape index: {}]
  %s2 = inlined_call_operand.hbm [shape: f32[1,512], index: 2, kind: input, shape index: {}]
  %s3 = inlined_call_operand.hbm [shape: bf16[512,512], index: 3, kind: input, shape index: {}]
  %s4 = inlined_call_operand.hbm [shape: f32[1,512], index: 4, kind: input, shape index: {}]
  %s5 = inlined_call_operand.hbm [shape: f32[2,512], index: 5, kind: output, shape index: {}]
  %s6 = sld [smem:[#allocation0]]
  $region81: #{tpu_custom_call.1} parent=0
    _
  %s8 = ssub.s32 1, %s6
  %s9 = scalar_select 0, %s8, %s6
  $region1: #{tpu_custom_call.1} parent=0
    #allocation3 [shape = 'u8[512]{0}', space=vmem, size = 0x400, scoped, tag = 'input window, operand 0, single buffered']
    #allocation4 [shape = 's32[2]{0}', space=sflag, size = 0x8, scoped, tag = 'scoped memory for tpu_custom_call.1']
    #allocation5 [shape = 's32[2]{0}', space=sflag, size = 0x8, scoped, tag = 'scoped memory for tpu_custom_call.1']
    #allocation6 [shape = 'u8[131072]{0}', space=vmem, size = 0x20000, scoped, tag = 'input window, operand 1']
    #allocation7 [shape = 's32[2]{0}', space=sflag, size = 0x8, scoped, tag = 'scoped memory for tpu_custom_call.1']
    #allocation8 [shape = 'u8[2048]{0}', space=vmem, size = 0x800, scoped, tag = 'input window, operand 2, single buffered']
    #allocation9 [shape = 'u8[524288]{0}', space=vmem, size = 0x80000, scoped, tag = 'input window, operand 3']
    #allocation10 [shape = 's32[2]{0}', space=sflag, size = 0x8, scoped, tag = 'scoped memory for tpu_custom_call.1']
    #allocation11 [shape = 'u8[2048]{0}', space=vmem, size = 0x800, scoped, tag = 'input window, operand 4, single buffered']
    #allocation12 [shape = 'u8[4096]{0}', space=vmem, size = 0x1000, scoped, tag = 'output window, operand 0, single buffered']
    %10 = vsyncpa [#allocation4], 0
    %11 = vsyncpa [#allocation7], 0
    %s12 = scalar_lea.sflag [#allocation7], 1
    %13 = vsyncpa %s12, 0
    %14 = vsyncpa [#allocation10], 0
    %s15 = scalar_lea.sflag [#allocation10], 1
    %16 = vsyncpa %s15, 0
    %17 = vsyncpa [#allocation5], 0
    loop: start=0, step=1, limit=4
    $region2: #{tpu_custom_call.1} parent=1 // loop_pre_header
      _
    $region3: #{tpu_custom_call.1} parent=1 // loop_header
      %s19 = sphi 0, %s23
      %p20 = scmp.ge.s32.totalorder %s19, 4
      %s27 = sphi 0, %s27
      %s29 = sphi 0, %s27
      %s30 = sphi 0, %s29
      %s44 = sphi 0, %s30
      %s50 = sphi 0, %s52
      %s53 = sphi 0, %s50
      %s54 = sphi 0, %s53
      %s70 = sphi 0, %s54
      %s74 = sphi 0, %s74
      %s76 = sphi 0, %s74
      %s77 = sphi 0, %s76
      %s91 = sphi 0, %s77
      %s97 = sphi 0, %s99
      %s100 = sphi 0, %s97
      %s101 = sphi 0, %s100
      %s117 = sphi 0, %s101
      %s121 = sphi 0, %s121
      %s123 = sphi 0, %s121
      %s124 = sphi 0, %s123
      %s138 = sphi 0, %s124
      %s142 = sphi 0, %s142
      %s144 = sphi 0, %s142
      %s145 = sphi 0, %s144
      %s159 = sphi 0, %s145
    $region4: #{tpu_custom_call.1} parent=1 // loop_header_branch
      %22 = sbr.rel (%p20) target = $region8
    $region5: #{tpu_custom_call.1} parent=1 // loop_body
      %s24 = ssub.s32 %s19, 1
      %s25 = ssub.s32 %s19, 2
      %s26 = sadd.s32 %s19, 1
      %s28 = sadd.s32 %s27, 1
      %p31 = scmp.eq.s32.totalorder %s19, 1
      %p32 = scmp.ne.s32.totalorder %s27, %s29
      %p33 = scmp.eq.s32.totalorder %s19, 0
      %p34 = por %p32, %p33
      %p35 = scmp.ne.s32.totalorder %s27, %s29
      %p36 = scmp.eq.s32.totalorder %s24, 1
      %p37 = por %p35, %p36
      %p38 = scmp.ne.s32.totalorder %s29, %s30
      %p39 = scmp.eq.s32.totalorder %s24, 0
      %p40 = por %p38, %p39
      %p41 = scmp.ne.s32.totalorder %s29, %s30
      %p42 = scmp.eq.s32.totalorder %s25, 1
      %p43 = por %p41, %p42
      %p45 = scmp.ne.s32.totalorder %s30, %s44
      %p46 = scmp.eq.s32.totalorder %s25, 0
      %p47 = por %p45, %p46
      %s48 = ssub.s32 %s19, %s26
      %p49 = scmp.eq.s32.totalorder %s48, 0
      %s51 = sadd.s32 %s50, 1
      %s52 = scalar_select %p49, %s50, %s51
      %p55 = pneg %p49
      %p56 = scmp.eq.s32.totalorder %s19, 1
      %p57 = por %p55, %p56
      %p58 = scmp.ne.s32.totalorder %s50, %s53
      %p59 = scmp.eq.s32.totalorder %s19, 0
      %p60 = por %p58, %p59
      %p61 = scmp.ne.s32.totalorder %s50, %s53
      %p62 = scmp.eq.s32.totalorder %s24, 1
      %p63 = por %p61, %p62
      %p64 = scmp.ne.s32.totalorder %s53, %s54
      %p65 = scmp.eq.s32.totalorder %s24, 0
      %p66 = por %p64, %p65
      %p67 = scmp.ne.s32.totalorder %s53, %s54
      %p68 = scmp.eq.s32.totalorder %s25, 1
      %p69 = por %p67, %p68
      %p71 = scmp.ne.s32.totalorder %s54, %s70
      %p72 = scmp.eq.s32.totalorder %s25, 0
      %p73 = por %p71, %p72
      %s75 = sadd.s32 %s74, 1
      %p78 = scmp.eq.s32.totalorder %s19, 1
      %p79 = scmp.ne.s32.totalorder %s74, %s76
      %p80 = scmp.eq.s32.totalorder %s19, 0
      %p81 = por %p79, %p80
      %p82 = scmp.ne.s32.totalorder %s74, %s76
      %p83 = scmp.eq.s32.totalorder %s24, 1
      %p84 = por %p82, %p83
      %p85 = scmp.ne.s32.totalorder %s76, %s77
      %p86 = scmp.eq.s32.totalorder %s24, 0
      %p87 = por %p85, %p86
      %p88 = scmp.ne.s32.totalorder %s76, %s77
      %p89 = scmp.eq.s32.totalorder %s25, 1
      %p90 = por %p88, %p89
      %p92 = scmp.ne.s32.totalorder %s77, %s91
      %p93 = scmp.eq.s32.totalorder %s25, 0
      %p94 = por %p92, %p93
      %s95 = ssub.s32 %s19, %s26
      %p96 = scmp.eq.s32.totalorder %s95, 0
      %s98 = sadd.s32 %s97, 1
      %s99 = scalar_select %p96, %s97, %s98
      %p102 = pneg %p96
      %p103 = scmp.eq.s32.totalorder %s19, 1
      %p104 = por %p102, %p103
      %p105 = scmp.ne.s32.totalorder %s97, %s100
      %p106 = scmp.eq.s32.totalorder %s19, 0
      %p107 = por %p105, %p106
      %p108 = scmp.ne.s32.totalorder %s97, %s100
      %p109 = scmp.eq.s32.totalorder %s24, 1
      %p110 = por %p108, %p109
      %p111 = scmp.ne.s32.totalorder %s100, %s101
      %p112 = scmp.eq.s32.totalorder %s24, 0
      %p113 = por %p111, %p112
      %p114 = scmp.ne.s32.totalorder %s100, %s101
      %p115 = scmp.eq.s32.totalorder %s25, 1
      %p116 = por %p114, %p115
      %p118 = scmp.ne.s32.totalorder %s101, %s117
      %p119 = scmp.eq.s32.totalorder %s25, 0
      %p120 = por %p118, %p119
      %s122 = sadd.s32 %s121, 1
      %p125 = scmp.eq.s32.totalorder %s19, 1
      %p126 = scmp.ne.s32.totalorder %s121, %s123
      %p127 = scmp.eq.s32.totalorder %s19, 0
      %p128 = por %p126, %p127
      %p129 = scmp.ne.s32.totalorder %s121, %s123
      %p130 = scmp.eq.s32.totalorder %s24, 1
      %p131 = por %p129, %p130
      %p132 = scmp.ne.s32.totalorder %s123, %s124
      %p133 = scmp.eq.s32.totalorder %s24, 0
      %p134 = por %p132, %p133
      %p135 = scmp.ne.s32.totalorder %s123, %s124
      %p136 = scmp.eq.s32.totalorder %s25, 1
      %p137 = por %p135, %p136
      %p139 = scmp.ne.s32.totalorder %s124, %s138
      %p140 = scmp.eq.s32.totalorder %s25, 0
      %p141 = por %p139, %p140
      %s143 = sadd.s32 %s142, 1
      %p146 = scmp.eq.s32.totalorder %s19, 1
      %p147 = scmp.ne.s32.totalorder %s142, %s144
      %p148 = scmp.eq.s32.totalorder %s19, 0
      %p149 = por %p147, %p148
      %p150 = scmp.ne.s32.totalorder %s142, %s144
      %p151 = scmp.eq.s32.totalorder %s24, 1
      %p152 = por %p150, %p151
      %p153 = scmp.ne.s32.totalorder %s144, %s145
      %p154 = scmp.eq.s32.totalorder %s24, 0
      %p155 = por %p153, %p154
      %p156 = scmp.ne.s32.totalorder %s144, %s145
      %p157 = scmp.eq.s32.totalorder %s25, 1
      %p158 = por %p156, %p157
      %p160 = scmp.ne.s32.totalorder %s145, %s159
      %p161 = scmp.eq.s32.totalorder %s25, 0
      %p162 = por %p160, %p161
      %p163 = scmp.le.s32.totalorder 1, %s19
      %p164 = scmp.lt.s32.totalorder %s19, 3
      %p165 = pnand %p163, %p164
      %p166 = pneg %p165
      // Predicated region
      $region9: #{tpu_custom_call.1} parent=5 // pred_check
        _
      $region10: #{tpu_custom_call.1} parent=5 // pred_check_branch
        %168 = sbr.rel (%p165) target = $region12
      $region11: #{tpu_custom_call.1} parent=5 // pred_region
        %s169 = ssub.s32 %s19, 1
        // Predicated region
        $region13: #{tpu_custom_call.1} parent=11 // pred_check
          %p170 = pneg %p40
        $region14: #{tpu_custom_call.1} parent=11 // pred_check_branch
          %172 = sbr.rel (%p170) target = $region16
        $region15: #{tpu_custom_call.1} parent=11 // pred_region
          %174 = vsyncadd [#allocation4], 0
          %s176 = sshll.u32 %s0, 4
          %s177 = int_to_ptr.hbm [resolvable:$true] %s176
          %s178 = sshll.u32 [#allocation3], 4
          %s179 = int_to_ptr.vmem [resolvable:$true] %s178
          %181 = dma.hbm_to_vmem [thread:$0]  %s177, 16, %s179, [#allocation4]
        $region16: #{tpu_custom_call.1} parent=11 // pred_fallthru
          _
        // Predicated region
        $region17: #{tpu_custom_call.1} parent=11 // pred_check
          %p182 = pneg %p87
        $region18: #{tpu_custom_call.1} parent=11 // pred_check_branch
          %184 = sbr.rel (%p182) target = $region20
        $region19: #{tpu_custom_call.1} parent=11 // pred_region
          %186 = vsyncadd [#allocation7], 0
          %s188 = sshll.u32 %s2, 4
          %s189 = int_to_ptr.hbm [resolvable:$true] %s188
          %s190 = sshll.u32 [#allocation8], 4
          %s191 = int_to_ptr.vmem [resolvable:$true] %s190
          %193 = dma.hbm_to_vmem [thread:$0]  %s189, 64, %s191, [#allocation7]
        $region20: #{tpu_custom_call.1} parent=11 // pred_fallthru
          _
        // Predicated region
        $region21: #{tpu_custom_call.1} parent=11 // pred_check
          %p194 = pneg %p134
        $region22: #{tpu_custom_call.1} parent=11 // pred_check_branch
          %196 = sbr.rel (%p194) target = $region24
        $region23: #{tpu_custom_call.1} parent=11 // pred_region
          %198 = vsyncadd [#allocation10], 0
          %s200 = sshll.u32 %s4, 4
          %s201 = int_to_ptr.hbm [resolvable:$true] %s200
          %s202 = sshll.u32 [#allocation11], 4
          %s203 = int_to_ptr.vmem [resolvable:$true] %s202
          %205 = dma.hbm_to_vmem [thread:$0]  %s201, 64, %s203, [#allocation10]
        $region24: #{tpu_custom_call.1} parent=11 // pred_fallthru
          _
      $region12: #{tpu_custom_call.1} parent=5 // pred_fallthru
        _
      %p206 = scmp.lt.s32.totalorder %s19, 2
      // Predicated region
      $region25: #{tpu_custom_call.1} parent=5 // pred_check
        %p207 = pneg %p206
      $region26: #{tpu_custom_call.1} parent=5 // pred_check_branch
        %209 = sbr.rel (%p207) target = $region28
      $region27: #{tpu_custom_call.1} parent=5 // pred_region
        // Predicated region
        $region29: #{tpu_custom_call.1} parent=27 // pred_check
          %p210 = pneg %p60
        $region30: #{tpu_custom_call.1} parent=27 // pred_check_branch
          %212 = sbr.rel (%p210) target = $region32
        $region31: #{tpu_custom_call.1} parent=27 // pred_region
          %s213 = sand.u32 %s19, 1
          %s214 = scalar_lea.sflag [#allocation7], %s213
          %s215 = sand.u32 %s50, 1
          %s216 = smul.addr %s215, 128
          %s217 = scalar_lea.vmem [#allocation6], %s216
          %s218 = smul.u32 2, %s19
          %220 = vsyncadd %s214, 0
          %s221 = smul.addr %s218, 4
          %s222 = scalar_lea.hbm %s1, %s221
          %s223 = sshll.u32 %s222, 4
          %s224 = int_to_ptr.hbm [resolvable:$true] %s223
          %s225 = sshll.u32 %s217, 4
          %s226 = int_to_ptr.vmem [resolvable:$true] %s225
          %231 = dma.hbm_to_vmem [thread:$0]  %s224, 2048, %s226, %s214, 256, 128, 8
        $region32: #{tpu_custom_call.1} parent=27 // pred_fallthru
          _
        // Predicated region
        $region33: #{tpu_custom_call.1} parent=27 // pred_check
          %p232 = pneg %p107
        $region34: #{tpu_custom_call.1} parent=27 // pred_check_branch
          %234 = sbr.rel (%p232) target = $region36
        $region35: #{tpu_custom_call.1} parent=27 // pred_region
          %s235 = sand.u32 %s19, 1
          %s236 = scalar_lea.sflag [#allocation10], %s235
          %s237 = sand.u32 %s97, 1
          %s238 = smul.addr %s237, 512
          %s239 = scalar_lea.vmem [#allocation9], %s238
          %s240 = smul.u32 32, %s19
          %242 = vsyncadd %s236, 0
          %s243 = smul.addr %s240, 4
          %s244 = smul.addr %s243, 4
          %s245 = scalar_lea.hbm %s3, %s244
          %s246 = sshll.u32 %s245, 4
          %s247 = int_to_ptr.hbm [resolvable:$true] %s246
          %s248 = sshll.u32 %s239, 4
          %s249 = int_to_ptr.vmem [resolvable:$true] %s248
          %254 = dma.hbm_to_vmem [thread:$0]  %s247, 8192, %s249, %s236, 256, 256, 16
        $region36: #{tpu_custom_call.1} parent=27 // pred_fallthru
          _
      $region28: #{tpu_custom_call.1} parent=5 // pred_fallthru
        _
      %p255 = scmp.le.s32.totalorder 1, %s19
      %p256 = scmp.lt.s32.totalorder %s19, 3
      %p257 = pnand %p255, %p256
      %p258 = pneg %p257
      // Predicated region
      $region37: #{tpu_custom_call.1} parent=5 // pred_check
        _
      $region38: #{tpu_custom_call.1} parent=5 // pred_check_branch
        %260 = sbr.rel (%p257) target = $region40
      $region39: #{tpu_custom_call.1} parent=5 // pred_region
        %s261 = ssub.s32 %s19, 1
        // Predicated region
        $region41: #{tpu_custom_call.1} parent=39 // pred_check
          %p262 = pneg %p40
        $region42: #{tpu_custom_call.1} parent=39 // pred_check_branch
          %264 = sbr.rel (%p262) target = $region44
        $region43: #{tpu_custom_call.1} parent=39 // pred_region
          %266 = dma.done [#allocation4], 16
        $region44: #{tpu_custom_call.1} parent=39 // pred_fallthru
          _
        %s267 = sand.u32 %s24, 1
        %s268 = scalar_lea.sflag [#allocation7], %s267
        %s269 = sand.u32 %s53, 1
        %s270 = smul.addr %s269, 128
        %s271 = scalar_lea.vmem [#allocation6], %s270
        // Predicated region
        $region45: #{tpu_custom_call.1} parent=39 // pred_check
          %p272 = pneg %p66
        $region46: #{tpu_custom_call.1} parent=39 // pred_check_branch
          %274 = sbr.rel (%p272) target = $region48
        $region47: #{tpu_custom_call.1} parent=39 // pred_region
          %276 = dma.done %s268, 2048
        $region48: #{tpu_custom_call.1} parent=39 // pred_fallthru
          _
        // Predicated region
        $region49: #{tpu_custom_call.1} parent=39 // pred_check
          %p277 = pneg %p87
        $region50: #{tpu_custom_call.1} parent=39 // pred_check_branch
          %279 = sbr.rel (%p277) target = $region52
        $region51: #{tpu_custom_call.1} parent=39 // pred_region
          %281 = dma.done [#allocation7], 64
        $region52: #{tpu_custom_call.1} parent=39 // pred_fallthru
          _
        %s282 = sand.u32 %s24, 1
        %s283 = scalar_lea.sflag [#allocation10], %s282
        %s284 = sand.u32 %s100, 1
        %s285 = smul.addr %s284, 512
        %s286 = scalar_lea.vmem [#allocation9], %s285
        // Predicated region
        $region53: #{tpu_custom_call.1} parent=39 // pred_check
          %p287 = pneg %p113
        $region54: #{tpu_custom_call.1} parent=39 // pred_check_branch
          %289 = sbr.rel (%p287) target = $region56
        $region55: #{tpu_custom_call.1} parent=39 // pred_region
          %291 = dma.done %s283, 8192
        $region56: #{tpu_custom_call.1} parent=39 // pred_fallthru
          _
        // Predicated region
        $region57: #{tpu_custom_call.1} parent=39 // pred_check
          %p292 = pneg %p134
        $region58: #{tpu_custom_call.1} parent=39 // pred_check_branch
          %294 = sbr.rel (%p292) target = $region60
        $region59: #{tpu_custom_call.1} parent=39 // pred_region
          %296 = dma.done [#allocation10], 64
        $region60: #{tpu_custom_call.1} parent=39 // pred_fallthru
          _
        %p297 = pneg %p40
        %p298 = pneg %p37
        %s299 = sand.u32 %s24, 1
        %s300 = scalar_lea.sflag [#allocation7], %s299
        %s301 = sand.u32 %s53, 1
        %s302 = smul.addr %s301, 128
        %s303 = scalar_lea.vmem [#allocation6], %s302
        %p304 = pneg %p66
        %p305 = pneg %p63
        %p306 = pneg %p87
        %p307 = pneg %p84
        %s308 = sand.u32 %s24, 1
        %s309 = scalar_lea.sflag [#allocation10], %s308
        %s310 = sand.u32 %s100, 1
        %s311 = smul.addr %s310, 512
        %s312 = scalar_lea.vmem [#allocation9], %s311
        %p313 = pneg %p113
        %p314 = pneg %p110
        %p315 = pneg %p134
        %p316 = pneg %p131
        %p317 = pneg %p155
        %p318 = pneg %p152
        %s319 = smul.u32 2, %s24
        %s320 = smul.u32 32, %s24
        %p321 = scmp.eq.s32.totalorder %s24, 0
        // Predicated region
        $region61: #{tpu_custom_call.1} parent=39 // pred_check
          %p322 = pneg %p321
        $region62: #{tpu_custom_call.1} parent=39 // pred_check_branch
          %324 = sbr.rel (%p322) target = $region64
        $region63: #{tpu_custom_call.1} parent=39 // pred_region
          %325 = vst [vmem:[#allocation2] sm:$0xff] 0.0
        $region64: #{tpu_custom_call.1} parent=39 // pred_fallthru
          _
        %v326 = vld [vmem:[#allocation3] sm:$0x1]
        %v327 = vld [vmem:[%s271] sm:$0xff]
        %v328 = vld [vmem:[%s271 + $0x8] sm:$0xff]
        %v329 = vld [vmem:[%s271 + $0x10] sm:$0xff]
        %v330 = vld [vmem:[%s271 + $0x18] sm:$0xff]
        %v331 = vld [vmem:[%s271 + $0x20] sm:$0xff]
        %v332 = vld [vmem:[%s271 + $0x28] sm:$0xff]
        %v333 = vld [vmem:[%s271 + $0x30] sm:$0xff]
        %v334 = vld [vmem:[%s271 + $0x38] sm:$0xff]
        %v335 = vld [vmem:[%s271 + $0x40] sm:$0xff]
        %v336 = vld [vmem:[%s271 + $0x48] sm:$0xff]
        %v337 = vld [vmem:[%s271 + $0x50] sm:$0xff]
        %v338 = vld [vmem:[%s271 + $0x58] sm:$0xff]
        %v339 = vld [vmem:[%s271 + $0x60] sm:$0xff]
        %v340 = vld [vmem:[%s271 + $0x68] sm:$0xff]
        %v341 = vld [vmem:[%s271 + $0x70] sm:$0xff]
        %v342 = vld [vmem:[%s271 + $0x78] sm:$0xff]
        %s343 = smul.u32 %s24, 256
        %s344 = sshra.s32 %s343, 7
        %s345 = sand.u32 %s343, 127
        %s346 = scalar_lea.vmem [#allocation8], %s344
        %v347 = vld [vmem:[%s346] sm:$0x3]
        %v349 = vperm.slane %v347, 0
        %v350 = vperm.slane %v347, 1
        %v369 = vunpack.c.l.b16 %v327
        %v370 = vunpack.c.h.b16 %v327
        %v371 = vunpack.c.l.b16 %v328
        %v372 = vunpack.c.h.b16 %v328
        %v373 = vunpack.c.l.b16 %v329
        %v374 = vunpack.c.h.b16 %v329
        %v375 = vunpack.c.l.b16 %v330
        %v376 = vunpack.c.h.b16 %v330
        %v377 = vunpack.c.l.b16 %v331
        %v378 = vunpack.c.h.b16 %v331
        %v379 = vunpack.c.l.b16 %v332
        %v380 = vunpack.c.h.b16 %v332
        %v381 = vunpack.c.l.b16 %v333
        %v382 = vunpack.c.h.b16 %v333
        %v383 = vunpack.c.l.b16 %v334
        %v384 = vunpack.c.h.b16 %v334
        %v385 = vunpack.c.l.b16 %v335
        %v386 = vunpack.c.h.b16 %v335
        %v387 = vunpack.c.l.b16 %v336
        %v388 = vunpack.c.h.b16 %v336
        %v389 = vunpack.c.l.b16 %v337
        %v390 = vunpack.c.h.b16 %v337
        %v391 = vunpack.c.l.b16 %v338
        %v392 = vunpack.c.h.b16 %v338
        %v393 = vunpack.c.l.b16 %v339
        %v394 = vunpack.c.h.b16 %v339
        %v395 = vunpack.c.l.b16 %v340
        %v396 = vunpack.c.h.b16 %v340
        %v397 = vunpack.c.l.b16 %v341
        %v398 = vunpack.c.h.b16 %v341
        %v399 = vunpack.c.l.b16 %v342
        %v400 = vunpack.c.h.b16 %v342
        %v401 = vpack.c.b16 %v371, %v369
        %v402 = vpack.c.b16 %v372, %v370
        %v403 = vpack.c.b16 %v375, %v373
        %v404 = vpack.c.b16 %v376, %v374
        %v405 = vpack.c.b16 %v379, %v377
        %v406 = vpack.c.b16 %v380, %v378
        %v407 = vpack.c.b16 %v383, %v381
        %v408 = vpack.c.b16 %v384, %v382
        %v409 = vpack.c.b16 %v387, %v385
        %v410 = vpack.c.b16 %v388, %v386
        %v411 = vpack.c.b16 %v391, %v389
        %v412 = vpack.c.b16 %v392, %v390
        %v413 = vpack.c.b16 %v395, %v393
        %v414 = vpack.c.b16 %v396, %v394
        %v415 = vpack.c.b16 %v399, %v397
        %v416 = vpack.c.b16 %v400, %v398
        %433 = vmatpush.bf16.msra.mxu0 %v415
        %434 = vmatpush.bf16.msra.mxu0 %v413
        %435 = vmatpush.bf16.msra.mxu0 %v411
        %436 = vmatpush.bf16.msra.mxu0 %v409
        %437 = vmatpush.bf16.msra.mxu0 %v407
        %438 = vmatpush.bf16.msra.mxu0 %v405
        %439 = vmatpush.bf16.msra.mxu0 %v403
        %440 = vmatpush.bf16.msra.mxu0 %v401
        %441 = vmatmul.bf16.gmra.mxu0 %v326
        %v442 = vpop.f32.mrf.mxu0
        %v443 = vadd.f32 %v349, %v442
        %v444 = vpop.f32.mrf.mxu0
        %445 = vdwg.mxu0
        %446 = vmatpush.bf16.msra.mxu0 %v416
        %447 = vmatpush.bf16.msra.mxu0 %v414
        %448 = vmatpush.bf16.msra.mxu0 %v412
        %449 = vmatpush.bf16.msra.mxu0 %v410
        %450 = vmatpush.bf16.msra.mxu0 %v408
        %451 = vmatpush.bf16.msra.mxu0 %v406
        %452 = vmatpush.bf16.msra.mxu0 %v404
        %453 = vmatpush.bf16.msra.mxu0 %v402
        %454 = vmatmul.bf16.gmra.mxu0 %v326
        %v455 = vpop.f32.mrf.mxu0
        %v456 = vadd.f32 %v350, %v455
        %v457 = vpop.f32.mrf.mxu0
        %458 = vdwg.mxu0
        %v459 = vxor.u32 %v443, 2147483648
        %v460 = vxor.u32 %v456, 2147483648
        %v461 = vmul.f32 %v459, 1.442695
        %v462 = vpow.pop %v461
        %v463 = vmul.f32 %v460, 1.442695
        %v464 = vpow.pop %v463
        %v465 = vadd.f32 %v462, 1.0
        %v466 = vadd.f32 %v464, 1.0
        %v467 = vrcp.pop %v465
        %v468 = vmul.f32 %v465, %v467
        %v469 = vsub.f32 1.0, %v468
        %v470 = vmul.f32 %v467, %v469
        %v471 = vadd.f32 %v467, %v470
        %vm472 = vweird.f32 %v465
        %vm473 = vweird.f32 %v467
        %vm474 = vmor %vm472, %vm473
        %v475 = vsel %vm474, %v467, %v471
        %v476 = vand.u32 2147483647, %v465
        %vm477 = vcmp.eq.f32.partialorder %v476, 8.507059e+37
        %v478 = vand.u32 %v465, 2147483648
        %v479 = vor.u32 1.1754944e-38, %v478
        %v480 = vsel %vm477, %v479, %v475
        %v481 = vmul.f32 1.0, %v480
        %v482 = vrcp.pop %v466
        %v483 = vmul.f32 %v466, %v482
        %v484 = vsub.f32 1.0, %v483
        %v485 = vmul.f32 %v482, %v484
        %v486 = vadd.f32 %v482, %v485
        %vm487 = vweird.f32 %v466
        %vm488 = vweird.f32 %v482
        %vm489 = vmor %vm487, %vm488
        %v490 = vsel %vm489, %v482, %v486
        %v491 = vand.u32 2147483647, %v466
        %vm492 = vcmp.eq.f32.partialorder %v491, 8.507059e+37
        %v493 = vand.u32 %v466, 2147483648
        %v494 = vor.u32 1.1754944e-38, %v493
        %v495 = vsel %vm492, %v494, %v490
        %v496 = vmul.f32 1.0, %v495
        %v497 = vmul.f32 %v443, %v481
        %v498 = vmul.f32 %v456, %v496
        %v499 = vld [vmem:[#allocation2] sm:$0xff]
        %v500 = vpack.c.bf16 %v497, %v497
        %v501 = vpack.c.bf16 %v498, %v498
        %v502 = vld [vmem:[%s286] sm:$0xff]
        %v503 = vld [vmem:[%s286 + $0x8] sm:$0xff]
        %v504 = vld [vmem:[%s286 + $0x10] sm:$0xff]
        %v505 = vld [vmem:[%s286 + $0x18] sm:$0xff]
        %v506 = vld [vmem:[%s286 + $0x20] sm:$0xff]
        %v507 = vld [vmem:[%s286 + $0x28] sm:$0xff]
        %v508 = vld [vmem:[%s286 + $0x30] sm:$0xff]
        %v509 = vld [vmem:[%s286 + $0x38] sm:$0xff]
        %v510 = vld [vmem:[%s286 + $0x40] sm:$0xff]
        %v511 = vld [vmem:[%s286 + $0x48] sm:$0xff]
        %v512 = vld [vmem:[%s286 + $0x50] sm:$0xff]
        %v513 = vld [vmem:[%s286 + $0x58] sm:$0xff]
        %v514 = vld [vmem:[%s286 + $0x60] sm:$0xff]
        %v515 = vld [vmem:[%s286 + $0x68] sm:$0xff]
        %v516 = vld [vmem:[%s286 + $0x70] sm:$0xff]
        %v517 = vld [vmem:[%s286 + $0x78] sm:$0xff]
        %v518 = vld [vmem:[%s286 + $0x80] sm:$0xff]
        %v519 = vld [vmem:[%s286 + $0x88] sm:$0xff]
        %v520 = vld [vmem:[%s286 + $0x90] sm:$0xff]
        %v521 = vld [vmem:[%s286 + $0x98] sm:$0xff]
        %v522 = vld [vmem:[%s286 + $0xa0] sm:$0xff]
        %v523 = vld [vmem:[%s286 + $0xa8] sm:$0xff]
        %v524 = vld [vmem:[%s286 + $0xb0] sm:$0xff]
        %v525 = vld [vmem:[%s286 + $0xb8] sm:$0xff]
        %v526 = vld [vmem:[%s286 + $0xc0] sm:$0xff]
        %v527 = vld [vmem:[%s286 + $0xc8] sm:$0xff]
        %v528 = vld [vmem:[%s286 + $0xd0] sm:$0xff]
        %v529 = vld [vmem:[%s286 + $0xd8] sm:$0xff]
        %v530 = vld [vmem:[%s286 + $0xe0] sm:$0xff]
        %v531 = vld [vmem:[%s286 + $0xe8] sm:$0xff]
        %v532 = vld [vmem:[%s286 + $0xf0] sm:$0xff]
        %v533 = vld [vmem:[%s286 + $0xf8] sm:$0xff]
        %v534 = vld [vmem:[%s286 + $0x100] sm:$0xff]
        %v535 = vld [vmem:[%s286 + $0x108] sm:$0xff]
        %v536 = vld [vmem:[%s286 + $0x110] sm:$0xff]
        %v537 = vld [vmem:[%s286 + $0x118] sm:$0xff]
        %v538 = vld [vmem:[%s286 + $0x120] sm:$0xff]
        %v539 = vld [vmem:[%s286 + $0x128] sm:$0xff]
        %v540 = vld [vmem:[%s286 + $0x130] sm:$0xff]
        %v541 = vld [vmem:[%s286 + $0x138] sm:$0xff]
        %v542 = vld [vmem:[%s286 + $0x140] sm:$0xff]
        %v543 = vld [vmem:[%s286 + $0x148] sm:$0xff]
        %v544 = vld [vmem:[%s286 + $0x150] sm:$0xff]
        %v545 = vld [vmem:[%s286 + $0x158] sm:$0xff]
        %v546 = vld [vmem:[%s286 + $0x160] sm:$0xff]
        %v547 = vld [vmem:[%s286 + $0x168] sm:$0xff]
        %v548 = vld [vmem:[%s286 + $0x170] sm:$0xff]
        %v549 = vld [vmem:[%s286 + $0x178] sm:$0xff]
        %v550 = vld [vmem:[%s286 + $0x180] sm:$0xff]
        %v551 = vld [vmem:[%s286 + $0x188] sm:$0xff]
        %v552 = vld [vmem:[%s286 + $0x190] sm:$0xff]
        %v553 = vld [vmem:[%s286 + $0x198] sm:$0xff]
        %v554 = vld [vmem:[%s286 + $0x1a0] sm:$0xff]
        %v555 = vld [vmem:[%s286 + $0x1a8] sm:$0xff]
        %v556 = vld [vmem:[%s286 + $0x1b0] sm:$0xff]
        %v557 = vld [vmem:[%s286 + $0x1b8] sm:$0xff]
        %v558 = vld [vmem:[%s286 + $0x1c0] sm:$0xff]
        %v559 = vld [vmem:[%s286 + $0x1c8] sm:$0xff]
        %v560 = vld [vmem:[%s286 + $0x1d0] sm:$0xff]
        %v561 = vld [vmem:[%s286 + $0x1d8] sm:$0xff]
        %v562 = vld [vmem:[%s286 + $0x1e0] sm:$0xff]
        %v563 = vld [vmem:[%s286 + $0x1e8] sm:$0xff]
        %v564 = vld [vmem:[%s286 + $0x1f0] sm:$0xff]
        %v565 = vld [vmem:[%s286 + $0x1f8] sm:$0xff]
        %v630 = vunpack.c.l.b16 %v502
        %v631 = vunpack.c.h.b16 %v502
        %v632 = vunpack.c.l.b16 %v503
        %v633 = vunpack.c.h.b16 %v503
        %v634 = vunpack.c.l.b16 %v504
        %v635 = vunpack.c.h.b16 %v504
        %v636 = vunpack.c.l.b16 %v505
        %v637 = vunpack.c.h.b16 %v505
        %v638 = vunpack.c.l.b16 %v506
        %v639 = vunpack.c.h.b16 %v506
        %v640 = vunpack.c.l.b16 %v507
        %v641 = vunpack.c.h.b16 %v507
        %v642 = vunpack.c.l.b16 %v508
        %v643 = vunpack.c.h.b16 %v508
        %v644 = vunpack.c.l.b16 %v509
        %v645 = vunpack.c.h.b16 %v509
        %v646 = vunpack.c.l.b16 %v510
        %v647 = vunpack.c.h.b16 %v510
        %v648 = vunpack.c.l.b16 %v511
        %v649 = vunpack.c.h.b16 %v511
        %v650 = vunpack.c.l.b16 %v512
        %v651 = vunpack.c.h.b16 %v512
        %v652 = vunpack.c.l.b16 %v513
        %v653 = vunpack.c.h.b16 %v513
        %v654 = vunpack.c.l.b16 %v514
        %v655 = vunpack.c.h.b16 %v514
        %v656 = vunpack.c.l.b16 %v515
        %v657 = vunpack.c.h.b16 %v515
        %v658 = vunpack.c.l.b16 %v516
        %v659 = vunpack.c.h.b16 %v516
        %v660 = vunpack.c.l.b16 %v517
        %v661 = vunpack.c.h.b16 %v517
        %v662 = vunpack.c.l.b16 %v518
        %v663 = vunpack.c.h.b16 %v518
        %v664 = vunpack.c.l.b16 %v519
        %v665 = vunpack.c.h.b16 %v519
        %v666 = vunpack.c.l.b16 %v520
        %v667 = vunpack.c.h.b16 %v520
        %v668 = vunpack.c.l.b16 %v521
        %v669 = vunpack.c.h.b16 %v521
        %v670 = vunpack.c.l.b16 %v522
        %v671 = vunpack.c.h.b16 %v522
        %v672 = vunpack.c.l.b16 %v523
        %v673 = vunpack.c.h.b16 %v523
        %v674 = vunpack.c.l.b16 %v524
        %v675 = vunpack.c.h.b16 %v524
        %v676 = vunpack.c.l.b16 %v525
        %v677 = vunpack.c.h.b16 %v525
        %v678 = vunpack.c.l.b16 %v526
        %v679 = vunpack.c.h.b16 %v526
        %v680 = vunpack.c.l.b16 %v527
        %v681 = vunpack.c.h.b16 %v527
        %v682 = vunpack.c.l.b16 %v528
        %v683 = vunpack.c.h.b16 %v528
        %v684 = vunpack.c.l.b16 %v529
        %v685 = vunpack.c.h.b16 %v529
        %v686 = vunpack.c.l.b16 %v530
        %v687 = vunpack.c.h.b16 %v530
        %v688 = vunpack.c.l.b16 %v531
        %v689 = vunpack.c.h.b16 %v531
        %v690 = vunpack.c.l.b16 %v532
        %v691 = vunpack.c.h.b16 %v532
        %v692 = vunpack.c.l.b16 %v533
        %v693 = vunpack.c.h.b16 %v533
        %v694 = vunpack.c.l.b16 %v534
        %v695 = vunpack.c.h.b16 %v534
        %v696 = vunpack.c.l.b16 %v535
        %v697 = vunpack.c.h.b16 %v535
        %v698 = vunpack.c.l.b16 %v536
        %v699 = vunpack.c.h.b16 %v536
        %v700 = vunpack.c.l.b16 %v537
        %v701 = vunpack.c.h.b16 %v537
        %v702 = vunpack.c.l.b16 %v538
        %v703 = vunpack.c.h.b16 %v538
        %v704 = vunpack.c.l.b16 %v539
        %v705 = vunpack.c.h.b16 %v539
        %v706 = vunpack.c.l.b16 %v540
        %v707 = vunpack.c.h.b16 %v540
        %v708 = vunpack.c.l.b16 %v541
        %v709 = vunpack.c.h.b16 %v541
        %v710 = vunpack.c.l.b16 %v542
        %v711 = vunpack.c.h.b16 %v542
        %v712 = vunpack.c.l.b16 %v543
        %v713 = vunpack.c.h.b16 %v543
        %v714 = vunpack.c.l.b16 %v544
        %v715 = vunpack.c.h.b16 %v544
        %v716 = vunpack.c.l.b16 %v545
        %v717 = vunpack.c.h.b16 %v545
        %v718 = vunpack.c.l.b16 %v546
        %v719 = vunpack.c.h.b16 %v546
        %v720 = vunpack.c.l.b16 %v547
        %v721 = vunpack.c.h.b16 %v547
        %v722 = vunpack.c.l.b16 %v548
        %v723 = vunpack.c.h.b16 %v548
        %v724 = vunpack.c.l.b16 %v549
        %v725 = vunpack.c.h.b16 %v549
        %v726 = vunpack.c.l.b16 %v550
        %v727 = vunpack.c.h.b16 %v550
        %v728 = vunpack.c.l.b16 %v551
        %v729 = vunpack.c.h.b16 %v551
        %v730 = vunpack.c.l.b16 %v552
        %v731 = vunpack.c.h.b16 %v552
        %v732 = vunpack.c.l.b16 %v553
        %v733 = vunpack.c.h.b16 %v553
        %v734 = vunpack.c.l.b16 %v554
        %v735 = vunpack.c.h.b16 %v554
        %v736 = vunpack.c.l.b16 %v555
        %v737 = vunpack.c.h.b16 %v555
        %v738 = vunpack.c.l.b16 %v556
        %v739 = vunpack.c.h.b16 %v556
        %v740 = vunpack.c.l.b16 %v557
        %v741 = vunpack.c.h.b16 %v557
        %v742 = vunpack.c.l.b16 %v558
        %v743 = vunpack.c.h.b16 %v558
        %v744 = vunpack.c.l.b16 %v559
        %v745 = vunpack.c.h.b16 %v559
        %v746 = vunpack.c.l.b16 %v560
        %v747 = vunpack.c.h.b16 %v560
        %v748 = vunpack.c.l.b16 %v561
        %v749 = vunpack.c.h.b16 %v561
        %v750 = vunpack.c.l.b16 %v562
        %v751 = vunpack.c.h.b16 %v562
        %v752 = vunpack.c.l.b16 %v563
        %v753 = vunpack.c.h.b16 %v563
        %v754 = vunpack.c.l.b16 %v564
        %v755 = vunpack.c.h.b16 %v564
        %v756 = vunpack.c.l.b16 %v565
        %v757 = vunpack.c.h.b16 %v565
        %v758 = vpack.c.b16 %v634, %v630
        %v759 = vpack.c.b16 %v635, %v631
        %v760 = vpack.c.b16 %v636, %v632
        %v761 = vpack.c.b16 %v637, %v633
        %v762 = vpack.c.b16 %v642, %v638
        %v763 = vpack.c.b16 %v643, %v639
        %v764 = vpack.c.b16 %v644, %v640
        %v765 = vpack.c.b16 %v645, %v641
        %v766 = vpack.c.b16 %v650, %v646
        %v767 = vpack.c.b16 %v651, %v647
        %v768 = vpack.c.b16 %v652, %v648
        %v769 = vpack.c.b16 %v653, %v649
        %v770 = vpack.c.b16 %v658, %v654
        %v771 = vpack.c.b16 %v659, %v655
        %v772 = vpack.c.b16 %v660, %v656
        %v773 = vpack.c.b16 %v661, %v657
        %v774 = vpack.c.b16 %v666, %v662
        %v775 = vpack.c.b16 %v667, %v663
        %v776 = vpack.c.b16 %v668, %v664
        %v777 = vpack.c.b16 %v669, %v665
        %v778 = vpack.c.b16 %v674, %v670
        %v779 = vpack.c.b16 %v675, %v671
        %v780 = vpack.c.b16 %v676, %v672
        %v781 = vpack.c.b16 %v677, %v673
        %v782 = vpack.c.b16 %v682, %v678
        %v783 = vpack.c.b16 %v683, %v679
        %v784 = vpack.c.b16 %v684, %v680
        %v785 = vpack.c.b16 %v685, %v681
        %v786 = vpack.c.b16 %v690, %v686
        %v787 = vpack.c.b16 %v691, %v687
        %v788 = vpack.c.b16 %v692, %v688
        %v789 = vpack.c.b16 %v693, %v689
        %v790 = vpack.c.b16 %v698, %v694
        %v791 = vpack.c.b16 %v699, %v695
        %v792 = vpack.c.b16 %v700, %v696
        %v793 = vpack.c.b16 %v701, %v697
        %v794 = vpack.c.b16 %v706, %v702
        %v795 = vpack.c.b16 %v707, %v703
        %v796 = vpack.c.b16 %v708, %v704
        %v797 = vpack.c.b16 %v709, %v705
        %v798 = vpack.c.b16 %v714, %v710
        %v799 = vpack.c.b16 %v715, %v711
        %v800 = vpack.c.b16 %v716, %v712
        %v801 = vpack.c.b16 %v717, %v713
        %v802 = vpack.c.b16 %v722, %v718
        %v803 = vpack.c.b16 %v723, %v719
        %v804 = vpack.c.b16 %v724, %v720
        %v805 = vpack.c.b16 %v725, %v721
        %v806 = vpack.c.b16 %v730, %v726
        %v807 = vpack.c.b16 %v731, %v727
        %v808 = vpack.c.b16 %v732, %v728
        %v809 = vpack.c.b16 %v733, %v729
        %v810 = vpack.c.b16 %v738, %v734
        %v811 = vpack.c.b16 %v739, %v735
        %v812 = vpack.c.b16 %v740, %v736
        %v813 = vpack.c.b16 %v741, %v737
        %v814 = vpack.c.b16 %v746, %v742
        %v815 = vpack.c.b16 %v747, %v743
        %v816 = vpack.c.b16 %v748, %v744
        %v817 = vpack.c.b16 %v749, %v745
        %v818 = vpack.c.b16 %v754, %v750
        %v819 = vpack.c.b16 %v755, %v751
        %v820 = vpack.c.b16 %v756, %v752
        %v821 = vpack.c.b16 %v757, %v753
        %886 = vmatpush.bf16.msra.mxu0 %v786
        %887 = vmatpush.bf16.msra.mxu0 %v782
        %888 = vmatpush.bf16.msra.mxu0 %v778
        %889 = vmatpush.bf16.msra.mxu0 %v774
        %890 = vmatpush.bf16.msra.mxu0 %v770
        %891 = vmatpush.bf16.msra.mxu0 %v766
        %892 = vmatpush.bf16.msra.mxu0 %v762
        %893 = vmatpush.bf16.msra.mxu0 %v758
        %894 = vmatmul.bf16.gmra.mxu0 %v500
        %v895 = vpop.f32.mrf.mxu0
        %v896 = vadd.f32 0.0, %v895
        %v897 = vpop.f32.mrf.mxu0
        %898 = vdwg.mxu0
        %899 = vmatpush.bf16.msra.mxu0 %v818
        %900 = vmatpush.bf16.msra.mxu0 %v814
        %901 = vmatpush.bf16.msra.mxu0 %v810
        %902 = vmatpush.bf16.msra.mxu0 %v806
        %903 = vmatpush.bf16.msra.mxu0 %v802
        %904 = vmatpush.bf16.msra.mxu0 %v798
        %905 = vmatpush.bf16.msra.mxu0 %v794
        %906 = vmatpush.bf16.msra.mxu0 %v790
        %907 = vmatmul.bf16.gmra.mxu0 %v501
        %v908 = vpop.f32.mrf.mxu0
        %v909 = vadd.f32 %v896, %v908
        %v910 = vpop.f32.mrf.mxu0
        %911 = vdwg.mxu0
        %912 = vmatpush.bf16.msra.mxu0 %v787
        %913 = vmatpush.bf16.msra.mxu0 %v783
        %914 = vmatpush.bf16.msra.mxu0 %v779
        %915 = vmatpush.bf16.msra.mxu0 %v775
        %916 = vmatpush.bf16.msra.mxu0 %v771
        %917 = vmatpush.bf16.msra.mxu0 %v767
        %918 = vmatpush.bf16.msra.mxu0 %v763
        %919 = vmatpush.bf16.msra.mxu0 %v759
        %920 = vmatmul.bf16.gmra.mxu0 %v500
        %v921 = vpop.f32.mrf.mxu0
        %v922 = vadd.f32 0.0, %v921
        %v923 = vpop.f32.mrf.mxu0
        %924 = vdwg.mxu0
        %925 = vmatpush.bf16.msra.mxu0 %v819
        %926 = vmatpush.bf16.msra.mxu0 %v815
        %927 = vmatpush.bf16.msra.mxu0 %v811
        %928 = vmatpush.bf16.msra.mxu0 %v807
        %929 = vmatpush.bf16.msra.mxu0 %v803
        %930 = vmatpush.bf16.msra.mxu0 %v799
        %931 = vmatpush.bf16.msra.mxu0 %v795
        %932 = vmatpush.bf16.msra.mxu0 %v791
        %933 = vmatmul.bf16.gmra.mxu0 %v501
        %v934 = vpop.f32.mrf.mxu0
        %v935 = vadd.f32 %v922, %v934
        %v936 = vpop.f32.mrf.mxu0
        %937 = vdwg.mxu0
        %938 = vmatpush.bf16.msra.mxu0 %v788
        %939 = vmatpush.bf16.msra.mxu0 %v784
        %940 = vmatpush.bf16.msra.mxu0 %v780
        %941 = vmatpush.bf16.msra.mxu0 %v776
        %942 = vmatpush.bf16.msra.mxu0 %v772
        %943 = vmatpush.bf16.msra.mxu0 %v768
        %944 = vmatpush.bf16.msra.mxu0 %v764
        %945 = vmatpush.bf16.msra.mxu0 %v760
        %946 = vmatmul.bf16.gmra.mxu0 %v500
        %v947 = vpop.f32.mrf.mxu0
        %v948 = vadd.f32 0.0, %v947
        %v949 = vpop.f32.mrf.mxu0
        %950 = vdwg.mxu0
        %951 = vmatpush.bf16.msra.mxu0 %v820
        %952 = vmatpush.bf16.msra.mxu0 %v816
        %953 = vmatpush.bf16.msra.mxu0 %v812
        %954 = vmatpush.bf16.msra.mxu0 %v808
        %955 = vmatpush.bf16.msra.mxu0 %v804
        %956 = vmatpush.bf16.msra.mxu0 %v800
        %957 = vmatpush.bf16.msra.mxu0 %v796
        %958 = vmatpush.bf16.msra.mxu0 %v792
        %959 = vmatmul.bf16.gmra.mxu0 %v501
        %v960 = vpop.f32.mrf.mxu0
        %v961 = vadd.f32 %v948, %v960
        %v962 = vpop.f32.mrf.mxu0
        %963 = vdwg.mxu0
        %964 = vmatpush.bf16.msra.mxu0 %v789
        %965 = vmatpush.bf16.msra.mxu0 %v785
        %966 = vmatpush.bf16.msra.mxu0 %v781
        %967 = vmatpush.bf16.msra.mxu0 %v777
        %968 = vmatpush.bf16.msra.mxu0 %v773
        %969 = vmatpush.bf16.msra.mxu0 %v769
        %970 = vmatpush.bf16.msra.mxu0 %v765
        %971 = vmatpush.bf16.msra.mxu0 %v761
        %972 = vmatmul.bf16.gmra.mxu0 %v500
        %v973 = vpop.f32.mrf.mxu0
        %v974 = vadd.f32 0.0, %v973
        %v975 = vpop.f32.mrf.mxu0
        %976 = vdwg.mxu0
        %977 = vmatpush.bf16.msra.mxu0 %v821
        %978 = vmatpush.bf16.msra.mxu0 %v817
        %979 = vmatpush.bf16.msra.mxu0 %v813
        %980 = vmatpush.bf16.msra.mxu0 %v809
        %981 = vmatpush.bf16.msra.mxu0 %v805
        %982 = vmatpush.bf16.msra.mxu0 %v801
        %983 = vmatpush.bf16.msra.mxu0 %v797
        %984 = vmatpush.bf16.msra.mxu0 %v793
        %985 = vmatmul.bf16.gmra.mxu0 %v501
        %v986 = vpop.f32.mrf.mxu0
        %v987 = vadd.f32 %v974, %v986
        %v988 = vpop.f32.mrf.mxu0
        %989 = vdwg.mxu0
        %v994 = vrot.slane %v935, 6
        %v995 = vrot.slane %v961, 4
        %v996 = vrot.slane %v987, 2
        %vm997 = vcmask 1041408
        %v998 = vsel %vm997, %v909, %v994
        %vm999 = vcmask 1045508
        %v1000 = vsel %vm999, %v995, %v996
        %vm1001 = vcmask 1043456
        %v1002 = vsel %vm1001, %v998, %v1000
        %v1004 = vadd.f32 %v499, %v1002
        %1005 = vst [vmem:[#allocation2] sm:$0xff] %v1004
        %p1006 = scmp.eq.s32.totalorder %s24, 1
        // Predicated region
        $region65: #{tpu_custom_call.1} parent=39 // pred_check
          %p1007 = pneg %p1006
        $region66: #{tpu_custom_call.1} parent=39 // pred_check_branch
          %1009 = sbr.rel (%p1007) target = $region68
        $region67: #{tpu_custom_call.1} parent=39 // pred_region
          %v1010 = vld [vmem:[#allocation2] sm:$0xff]
          %v1011 = vld [vmem:[#allocation11] sm:$0xf]
          %v1013 = vperm.slane %v1011, 0
          %v1014 = vperm.slane %v1011, 1
          %v1015 = vperm.slane %v1011, 2
          %v1016 = vperm.slane %v1011, 3
          %v1017 = vrot.slane %v1014, 6
          %v1018 = vrot.slane %v1015, 4
          %v1019 = vrot.slane %v1016, 2
          %v1020 = vsel %vm997, %v1013, %v1017
          %v1021 = vsel %vm999, %v1018, %v1019
          %v1022 = vsel %vm1001, %v1020, %v1021
          %v1024 = vadd.f32 %v1010, %v1022
          %1025 = vst [vmem:[#allocation12] sm:$0xff] %v1024
        $region68: #{tpu_custom_call.1} parent=39 // pred_fallthru
          _
        // Predicated region
        $region69: #{tpu_custom_call.1} parent=39 // pred_check
          %p1026 = pneg %p152
        $region70: #{tpu_custom_call.1} parent=39 // pred_check_branch
          %1028 = sbr.rel (%p1026) target = $region72
        $region71: #{tpu_custom_call.1} parent=39 // pred_region
          %1030 = vsyncadd [#allocation5], 0
          %s1032 = sshll.u32 [#allocation12], 4
          %s1033 = int_to_ptr.vmem [resolvable:$true] %s1032
          %s1034 = sshll.u32 %s5, 4
          %s1035 = int_to_ptr.hbm [resolvable:$true] %s1034
          %1037 = dma.vmem_to_hbm [thread:$0]  %s1033, 128, %s1035, [#allocation5]
        $region72: #{tpu_custom_call.1} parent=39 // pred_fallthru
          _
        // Predicated region
        $region73: #{tpu_custom_call.1} parent=39 // pred_check
          %p1038 = pneg %p152
        $region74: #{tpu_custom_call.1} parent=39 // pred_check_branch
          %1040 = sbr.rel (%p1038) target = $region76
        $region75: #{tpu_custom_call.1} parent=39 // pred_region
          %1042 = dma.done [#allocation5], 128
        $region76: #{tpu_custom_call.1} parent=39 // pred_fallthru
          _
      $region40: #{tpu_custom_call.1} parent=5 // pred_fallthru
        _
      %p1043 = scmp.le.s32.totalorder 2, %s19
      // Predicated region
      $region77: #{tpu_custom_call.1} parent=5 // pred_check
        %p1044 = pneg %p1043
      $region78: #{tpu_custom_call.1} parent=5 // pred_check_branch
        %1046 = sbr.rel (%p1044) target = $region80
      $region79: #{tpu_custom_call.1} parent=5 // pred_region
        %s1047 = ssub.s32 %s19, 2
      $region80: #{tpu_custom_call.1} parent=5 // pred_fallthru
        _
    $region6: #{tpu_custom_call.1} parent=1 // loop_footer
      %s23 = sadd.s32 1, %s19
    $region7: #{tpu_custom_call.1} parent=1 // loop_footer_branch
      %18 = sbr.rel target = $region3
    $region8: #{tpu_custom_call.1} parent=1 // loop_exit
      _
    %1048 = vsyncpa [#allocation4], 1
    %s1049 = scalar_lea.sflag [#allocation4], 1
    %1050 = vsyncpa %s1049, 1
    %1051 = vsyncpa [#allocation7], 1
    %s1052 = scalar_lea.sflag [#allocation7], 1
    %1053 = vsyncpa %s1052, 1
    %1054 = vsyncpa [#allocation10], 1
    %s1055 = scalar_lea.sflag [#allocation10], 1
    %1056 = vsyncpa %s1055, 1
    %1057 = vsyncpa [#allocation5], 1
    %s1058 = scalar_lea.sflag [#allocation5], 1
    %1059 = vsyncpa %s1058, 1

</llo_original>
